<compile_context>
chip_gen: v5e
topology: v5e:2x2
jax: 0.10.0
libtpu: 0.0.40
codegen_flags: <defaults>
</compile_context>

<pallas_src>
import functools

import jax
import jax.numpy as jnp
from jax.experimental import pallas as pl
from jax.experimental.pallas import tpu as pltpu

BN_EPS = 1e-5


def _round_up(x, m):
    return (x + m - 1) // m * m


def _pick_tile(size, candidates):
    for c in candidates:
        if size % c == 0:
            return c
    return candidates[-1]


def _pad_k(k):
    # Avoid padding K all the way to 128 multiples (stem K=147 would waste 74%):
    # a non-128 K is legal when the K block equals the full (padded) extent.
    if k % 128 == 0:
        return k
    k16 = _round_up(k, 16)
    return k16 if k16 <= 4096 else _round_up(k, 128)


# ---------------------------------------------------------------------------
# Fused GEMM kernels: out = maybe_relu(A @ B * scale + shift [+ residual])
# A/B tiles are bf16 (native MXU path), accumulation and epilogue are f32.
# ---------------------------------------------------------------------------
def _mm_kernel(a_ref, b_ref, scale_ref, shift_ref, o_ref, acc_ref, *, relu):
    @pl.when(pl.program_id(2) == 0)
    def _():
        acc_ref[...] = jnp.zeros_like(acc_ref)

    acc_ref[...] += jnp.dot(a_ref[...], b_ref[...],
                            preferred_element_type=jnp.float32)

    @pl.when(pl.program_id(2) == pl.num_programs(2) - 1)
    def _():
        out = acc_ref[...] * scale_ref[...] + shift_ref[...]
        if relu:
            out = jnp.maximum(out, 0.0)
        o_ref[...] = out.astype(o_ref.dtype)


def _mm_res_kernel(a_ref, b_ref, scale_ref, shift_ref, res_ref, o_ref, acc_ref,
                   *, relu):
    @pl.when(pl.program_id(2) == 0)
    def _():
        acc_ref[...] = jnp.zeros_like(acc_ref)

    acc_ref[...] += jnp.dot(a_ref[...], b_ref[...],
                            preferred_element_type=jnp.float32)

    @pl.when(pl.program_id(2) == pl.num_programs(2) - 1)
    def _():
        out = (acc_ref[...] * scale_ref[...] + shift_ref[...]
               + res_ref[...].astype(jnp.float32))
        if relu:
            out = jnp.maximum(out, 0.0)
        o_ref[...] = out.astype(o_ref.dtype)


def _prep_gemm(w, scale=None, shift=None, kh=1, kw=1):
    """Pre-pad + pre-cast a (K, N) weight and its per-column scale/shift once."""
    K, N = w.shape
    Kp, Np = _pad_k(K), _round_up(N, 128)
    if scale is None:
        scale = jnp.ones((N,), jnp.float32)
    if shift is None:
        shift = jnp.zeros((N,), jnp.float32)
    return {
        "w": jnp.pad(w.astype(jnp.float32),
                     ((0, Kp - K), (0, Np - N))).astype(jnp.bfloat16),
        "scale": jnp.pad(scale.astype(jnp.float32), (0, Np - N)).reshape(1, Np),
        "shift": jnp.pad(shift.astype(jnp.float32), (0, Np - N)).reshape(1, Np),
        "k": K, "n": N, "kh": kh, "kw": kw,
    }


def matmul_fused(a, pack, residual=None, relu=False, out_dtype=jnp.bfloat16):
    """bf16 MXU GEMM with fused per-column scale/shift (+residual) and ReLU."""
    M, K = a.shape
    Kp, Np = pack["w"].shape
    N = pack["n"]
    assert K == pack["k"], (K, pack["k"])

    # M tiling: 128-aligned minimum (full 256x256 MXU cadence on v6e/v7x).
    Mp = _round_up(M, 128)
    if Mp >= 512 and Mp % 256 == 0:
        tm = 256
    elif Mp >= 512:
        tm = 128
    else:
        tm = Mp
    # If M fits in one block, prefer tn=256 so the N axis still has >=2 blocks
    # (keeps v7x's second TensorCore busy on the wide conv3/downsample GEMMs).
    if Mp // tm == 1:
        tn = _pick_tile(Np, (256, 512, 128))
    else:
        tn = _pick_tile(Np, (512, 256, 128))
    tk = _pick_tile(Kp, (512, 384, 256, 128)) if Kp % 128 == 0 else Kp

    a_p = a.astype(jnp.bfloat16)
    if Mp != M or Kp != K:
        a_p = jnp.pad(a_p, ((0, Mp - M), (0, Kp - K)))

    grid = (Mp // tm, Np // tn, Kp // tk)

    in_specs = [
        pl.BlockSpec((tm, tk), lambda i, j, k: (i, k)),
        pl.BlockSpec((tk, tn), lambda i, j, k: (k, j)),
        pl.BlockSpec((1, tn), lambda i, j, k: (0, j)),
        pl.BlockSpec((1, tn), lambda i, j, k: (0, j)),
    ]
    args = [a_p, pack["w"], pack["scale"], pack["shift"]]
    bytes_accessed = (Mp * Kp + Kp * Np) * 2 + Mp * Np * jnp.dtype(out_dtype).itemsize
    if residual is not None:
        res_p = residual.astype(jnp.bfloat16)
        if Mp != M or Np != N:
            res_p = jnp.pad(res_p, ((0, Mp - M), (0, Np - N)))
        in_specs.append(pl.BlockSpec((tm, tn), lambda i, j, k: (i, j)))
        args.append(res_p)
        bytes_accessed += Mp * Np * 2
        kernel = functools.partial(_mm_res_kernel, relu=relu)
    else:
        kernel = functools.partial(_mm_kernel, relu=relu)

    out = pl.pallas_call(
        kernel,
        out_shape=jax.ShapeDtypeStruct((Mp, Np), out_dtype),
        grid_spec=pltpu.PrefetchScalarGridSpec(
            num_scalar_prefetch=0,
            grid=grid,
            in_specs=in_specs,
            out_specs=pl.BlockSpec((tm, tn), lambda i, j, k: (i, j)),
            scratch_shapes=[pltpu.VMEM((tm, tn), jnp.float32)],
        ),
        compiler_params=pltpu.CompilerParams(
            dimension_semantics=("parallel", "parallel", "arbitrary"),
            vmem_limit_bytes=32 * 1024 * 1024,   # legal on v5e/v6e/v7x
        ),
        cost_estimate=pl.CostEstimate(flops=2 * Mp * Np * Kp,
                                      transcendentals=0,
                                      bytes_accessed=bytes_accessed),
    )(*args)
    return out[:M, :N]


# ---------------------------------------------------------------------------
# Conv2d (im2col glue) + BN + ReLU [+ residual]; heavy math in the GEMM kernel
# ---------------------------------------------------------------------------
def conv_bn(x, p, stride, padding, relu, residual=None):
    # x: (B, H, W, Cin) NHWC bf16 ; p: prepped GEMM pack with kh/kw metadata
    B, H, W, Cin = x.shape
    KH, KW = p["kh"], p["kw"]
    Ho = (H + 2 * padding - KH) // stride + 1
    Wo = (W + 2 * padding - KW) // stride + 1
    if padding > 0:
        x = jnp.pad(x, ((0, 0), (padding, padding), (padding, padding), (0, 0)))
    if KH == 1 and KW == 1:
        a = x[:, 0:stride * Ho:stride, 0:stride * Wo:stride, :]
        a = a.reshape(B * Ho * Wo, Cin)
    else:
        cols = []
        for kh in range(KH):
            for kw in range(KW):
                cols.append(x[:, kh:kh + stride * Ho:stride,
                              kw:kw + stride * Wo:stride, :])
        a = jnp.concatenate(cols, axis=-1).reshape(B * Ho * Wo, KH * KW * Cin)
    res = None if residual is None else residual.reshape(B * Ho * Wo, p["n"])
    out = matmul_fused(a, p, residual=res, relu=relu, out_dtype=jnp.bfloat16)
    return out.reshape(B, Ho, Wo, p["n"])


# ---------------------------------------------------------------------------
# Pooling kernels
# ---------------------------------------------------------------------------
def _max9_kernel(*refs):
    o_ref = refs[-1]
    m = refs[0][...]
    for r in refs[1:-1]:
        m = jnp.maximum(m, r[...])
    o_ref[...] = m


def maxpool_3x3_s2_p1(x):
    B, H, W, C = x.shape
    Ho = (H + 2 - 3) // 2 + 1
    Wo = (W + 2 - 3) // 2 + 1
    neg = float(jnp.finfo(x.dtype).min)
    xp = jnp.pad(x, ((0, 0), (1, 1), (1, 1), (0, 0)), constant_values=neg)
    slabs = []
    for kh in range(3):
        for kw in range(3):
            s = xp[:, kh:kh + 2 * Ho:2, kw:kw + 2 * Wo:2, :]
            # Fold W*C so the kernel's last dim is lane-dense (multiple of 128).
            slabs.append(s.reshape(B * Ho, Wo * C))
    R, Cw = B * Ho, Wo * C
    tm = 16 if R % 16 == 0 else (8 if R % 8 == 0 else R)
    out = pl.pallas_call(
        _max9_kernel,
        out_shape=jax.ShapeDtypeStruct((R, Cw), x.dtype),
        grid_spec=pltpu.PrefetchScalarGridSpec(
            num_scalar_prefetch=0,
            grid=(R // tm,),
            in_specs=[pl.BlockSpec((tm, Cw), lambda i: (i, 0))
                      for _ in range(9)],
            out_specs=pl.BlockSpec((tm, Cw), lambda i: (i, 0)),
        ),
        compiler_params=pltpu.CompilerParams(
            dimension_semantics=("parallel",)),
    )(*slabs)
    return out.reshape(B, Ho, Wo, C)


def _avgpool_kernel(x_ref, o_ref):
    o_ref[...] = jnp.mean(x_ref[...].astype(jnp.float32), axis=1)


def global_avgpool(x):
    B, H, W, C = x.shape  # AvgPool2d(7, stride=1) on a 7x7 map -> (B, C)
    xr = x.reshape(B, H * W, C)
    return pl.pallas_call(
        _avgpool_kernel,
        out_shape=jax.ShapeDtypeStruct((B, C), jnp.float32),
    )(xr)


# ---------------------------------------------------------------------------
# LSTM: one Pallas kernel per (layer, direction); grid=(L,) "arbitrary",
# h/c resident in VMEM scratch, w_hh pinned (constant index_map).
# ---------------------------------------------------------------------------
def _lstm_seq_kernel(pre_ref, whh_ref, hs_ref, h_sc, c_sc):
    @pl.when(pl.program_id(0) == 0)
    def _():
        h_sc[...] = jnp.zeros_like(h_sc)
        c_sc[...] = jnp.zeros_like(c_sc)

    H = h_sc.shape[-1]
    gates = pre_ref[0] + jnp.dot(h_sc[...], whh_ref[...],
                                 preferred_element_type=jnp.float32)
    i = jax.nn.sigmoid(gates[:, 0:H])
    f = jax.nn.sigmoid(gates[:, H:2 * H])
    g = jnp.tanh(gates[:, 2 * H:3 * H])
    o = jax.nn.sigmoid(gates[:, 3 * H:4 * H])
    c_new = f * c_sc[...] + i * g
    h_new = o * jnp.tanh(c_new)
    c_sc[...] = c_new
    h_sc[...] = h_new
    hs_ref[0] = h_new


def _lstm_dir(pre_t, w_hh, hidden):
    L, B, _ = pre_t.shape
    return pl.pallas_call(
        _lstm_seq_kernel,
        out_shape=jax.ShapeDtypeStruct((L, B, hidden), jnp.float32),
        grid_spec=pltpu.PrefetchScalarGridSpec(
            num_scalar_prefetch=0,
            grid=(L,),
            in_specs=[pl.BlockSpec((1, B, 4 * hidden), lambda t: (t, 0, 0)),
                      pl.BlockSpec((hidden, 4 * hidden), lambda t: (0, 0))],
            out_specs=pl.BlockSpec((1, B, hidden), lambda t: (t, 0, 0)),
            scratch_shapes=[pltpu.VMEM((B, hidden), jnp.float32),
                            pltpu.VMEM((B, hidden), jnp.float32)],
        ),
        compiler_params=pltpu.CompilerParams(
            dimension_semantics=("arbitrary",)),
    )(pre_t, w_hh)


def lstm_bidirectional(x, lstm_params, num_layers, hidden):
    B, L, _ = x.shape
    out = x
    for layer in range(num_layers):
        In = out.shape[-1]
        dir_outs = []
        for d in range(2):
            p = lstm_params[f"l{layer}_d{d}"]
            # input projection for all timesteps at once (Pallas GEMM)
            pre = matmul_fused(out.reshape(B * L, In), p["ih"],
                               out_dtype=jnp.float32).reshape(B, L, 4 * hidden)
            if d == 1:
                pre = pre[:, ::-1, :]
            hs = _lstm_dir(jnp.transpose(pre, (1, 0, 2)), p["w_hh_T"], hidden)
            hs = jnp.transpose(hs, (1, 0, 2))  # (B, L, H)
            if d == 1:
                hs = hs[:, ::-1, :]
            dir_outs.append(hs)
        out = jnp.concatenate(dir_outs, axis=-1)
        # inter-layer dropout: identity in eval mode
    return out


# ---------------------------------------------------------------------------
# ResNet pieces + full forward
# ---------------------------------------------------------------------------
def bottleneck_forward(x, p):
    out = conv_bn(x, p["c1"], stride=1, padding=0, relu=True)
    out = conv_bn(out, p["c2"], stride=p["stride"], padding=1, relu=True)
    if p["downsampling"]:
        residual = conv_bn(x, p["cd"], stride=p["stride"], padding=0, relu=False)
    else:
        residual = x
    # conv3 + BN + residual add + ReLU fused into one Pallas GEMM epilogue
    out = conv_bn(out, p["c3"], stride=1, padding=0, relu=True,
                  residual=residual)
    return out


def model_forward(params, text, image_nchw, cfg):
    # --- text branch ---
    text_ids, _ = text
    emb = params["embedding"][text_ids]                         # (B, L, E)
    lstm_out = lstm_bidirectional(emb, params["lstm"],
                                  cfg["num_layers"], cfg["hidden_size"])
    last = lstm_out[:, -1, :]                                    # (B, 2H)
    text_feat = matmul_fused(last, params["fc1"], out_dtype=jnp.float32)

    # --- image branch (NHWC bf16 internally, f32 accumulation) ---
    x = jnp.transpose(image_nchw, (0, 2, 3, 1)).astype(jnp.bfloat16)
    x = conv_bn(x, params["stem"], stride=2, padding=3, relu=True)
    x = maxpool_3x3_s2_p1(x)
    for layer_blocks in params["layers"]:
        for bp in layer_blocks:
            x = bottleneck_forward(x, bp)
    feat = global_avgpool(x)                                     # (B, 2048) f32

    # --- fusion head ---
    cat = jnp.concatenate([feat, text_feat], axis=1)             # (B, 2049)
    return matmul_fused(cat, params["fc2"], out_dtype=jnp.float32)


# ---------------------------------------------------------------------------
# Deterministic parameter init (mirrors the module's __init__ shapes);
# all GEMM weights are padded/reshaped/cast once here, not per forward.
# ---------------------------------------------------------------------------
def init_params(key, cfg, blocks):
    keys = iter(jax.random.split(key, 256))

    def nk():
        return next(keys)

    p = {}

    # Embedding (padding_idx = n_vocab - 1)
    emb = jax.random.normal(nk(), (cfg["n_vocab"], cfg["embed"]), jnp.float32)
    p["embedding"] = emb.at[cfg["n_vocab"] - 1].set(0.0)

    # LSTM (bidirectional, num_layers, batch_first)
    H = cfg["hidden_size"]
    klstm = 1.0 / (H ** 0.5)
    lstm = {}
    for layer in range(cfg["num_layers"]):
        In = cfg["embed"] if layer == 0 else 2 * H
        for d in range(2):
            w_ih = jax.random.uniform(nk(), (In, 4 * H), jnp.float32,
                                      -klstm, klstm)
            w_hh = jax.random.uniform(nk(), (H, 4 * H), jnp.float32,
                                      -klstm, klstm)
            b_ih = jax.random.uniform(nk(), (4 * H,), jnp.float32,
                                      -klstm, klstm)
            b_hh = jax.random.uniform(nk(), (4 * H,), jnp.float32,
                                      -klstm, klstm)
            lstm[f"l{layer}_d{d}"] = {
                "ih": _prep_gemm(w_ih, shift=b_ih + b_hh),
                "w_hh_T": w_hh,
            }
    p["lstm"] = lstm

    # fc1: (hidden*2 -> 1)
    k1 = 1.0 / ((2 * H) ** 0.5)
    p["fc1"] = _prep_gemm(
        jax.random.uniform(nk(), (2 * H, 1), jnp.float32, -k1, k1),
        shift=jax.random.uniform(nk(), (1,), jnp.float32, -k1, k1))

    def conv_pack(kh, kw, cin, cout):
        std = (2.0 / (cout * kh * kw)) ** 0.5  # kaiming_normal, fan_out, relu
        w = std * jax.random.normal(nk(), (kh, kw, cin, cout), jnp.float32)
        # eval-mode BN with gamma=1, beta=0, running_mean=0, running_var=1
        scale = jnp.full((cout,), 1.0 / (1.0 + BN_EPS) ** 0.5, jnp.float32)
        shift = jnp.zeros((cout,), jnp.float32)
        return _prep_gemm(w.reshape(kh * kw * cin, cout), scale, shift, kh, kw)

    p["stem"] = conv_pack(7, 7, 3, 64)

    expansion = 4
    layer_cfg = [(64, 64, blocks[0], 1), (256, 128, blocks[1], 2),
                 (512, 256, blocks[2], 2), (1024, 512, blocks[3], 2)]
    layers = []
    for in_places, places, nblock, stride in layer_cfg:
        blocks_p = []
        for bi in range(nblock):
            if bi == 0:
                bin_, bstride, down = in_places, stride, True
            else:
                bin_, bstride, down = places * expansion, 1, False
            bp = {"stride": bstride, "downsampling": down,
                  "c1": conv_pack(1, 1, bin_, places),
                  "c2": conv_pack(3, 3, places, places),
                  "c3": conv_pack(1, 1, places, places * expansion)}
            if down:
                bp["cd"] = conv_pack(1, 1, bin_, places * expansion)
            blocks_p.append(bp)
        layers.append(blocks_p)
    p["layers"] = layers

    # fc2: (2048 + 1 -> num_classes)
    k2 = 1.0 / ((2048 + 1) ** 0.5)
    p["fc2"] = _prep_gemm(
        jax.random.uniform(nk(), (2048 + 1, cfg["num_classes"]),
                           jnp.float32, -k2, k2),
        shift=jax.random.uniform(nk(), (cfg["num_classes"],), jnp.float32,
                                 -k2, k2))
    return p


if __name__ == "__main__":
    cfg = dict(n_vocab=50, embed=32, hidden_size=32, num_layers=2,
               dropout=0.5, num_classes=4)
    blocks = (1, 1, 1, 1)   # one Bottleneck per stage (small ResNet)
    B, L = 2, 8

    key = jax.random.PRNGKey(0)
    kp, kt, ki = jax.random.split(key, 3)
    params = init_params(kp, cfg, blocks)

    text_ids = jax.random.randint(kt, (B, L), 0, cfg["n_vocab"],
                                  dtype=jnp.int32)
    seq_len = jnp.full((B,), L, dtype=jnp.int32)
    # 224x224 is forced by the architecture (avgpool(7) + fc2(2048+1))
    image = jax.random.normal(ki, (B, 3, 224, 224), dtype=jnp.float32)

    out = model_forward(params, (text_ids, seq_len), image, cfg)
    out = jax.block_until_ready(out)
    assert out.shape == (B, cfg["num_classes"])
    print("KERNEL_OK")
</pallas_src>

<mosaic_0001>
module attributes {stable_mosaic.version = 11 : i64} {
  func.func @_mm_kernel(%arg0: i32, %arg1: i32, %arg2: i32, %arg3: memref<128x32xbf16, #tpu.memory_space<vmem>>, %arg4: memref<32x128xbf16, #tpu.memory_space<vmem>>, %arg5: memref<1x128xf32, #tpu.memory_space<vmem>>, %arg6: memref<1x128xf32, #tpu.memory_space<vmem>>, %arg7: memref<128x128xf32, #tpu.memory_space<vmem>>, %arg8: memref<128x128xf32, #tpu.memory_space<vmem>>) attributes {dimension_semantics = [#tpu.dimension_semantics<parallel>, #tpu.dimension_semantics<parallel>, #tpu.dimension_semantics<arbitrary>], iteration_bounds = array<i64: 1, 1, 1>, scalar_prefetch = 0 : i64, scratch_operands = 1 : i64, tpu.core_type = #tpu.core_type<tc>, window_params = [{transform_indices = @transform_0, window_bounds = array<i64: 128, 32>}, {transform_indices = @transform_1, window_bounds = array<i64: 32, 128>}, {transform_indices = @transform_2, window_bounds = array<i64: 1, 128>}, {transform_indices = @transform_3, window_bounds = array<i64: 1, 128>}, {transform_indices = @transform_4, window_bounds = array<i64: 128, 128>}]} {
    %c0_i32 = arith.constant 0 : i32
    %0 = arith.cmpi eq, %arg2, %c0_i32 : i32
    %1 = arith.extui %0 : i1 to i32
    %c0_i32_0 = arith.constant 0 : i32
    %2 = arith.cmpi ne, %1, %c0_i32_0 : i32
    scf.if %2 {
      %cst_10 = arith.constant 0.000000e+00 : f32
      %12 = vector.broadcast %cst_10 : f32 to vector<128x128xf32>
      %c0_11 = arith.constant 0 : index
      %c0_12 = arith.constant 0 : index
      %13 = vector.load %arg8[%c0_11, %c0_12] : memref<128x128xf32, #tpu.memory_space<vmem>>, vector<128x128xf32>
      tpu.vector_store %arg8[%c0_11, %c0_12], %12 {strides = array<i32>} : memref<128x128xf32, #tpu.memory_space<vmem>>, vector<128x128xf32>,
    } else {
    }
    %c0 = arith.constant 0 : index
    %c0_1 = arith.constant 0 : index
    %3 = vector.load %arg8[%c0, %c0_1] : memref<128x128xf32, #tpu.memory_space<vmem>>, vector<128x128xf32>
    %c0_2 = arith.constant 0 : index
    %c0_3 = arith.constant 0 : index
    %4 = vector.load %arg3[%c0_2, %c0_3] : memref<128x32xbf16, #tpu.memory_space<vmem>>, vector<128x32xbf16>
    %c0_4 = arith.constant 0 : index
    %c0_5 = arith.constant 0 : index
    %5 = vector.load %arg4[%c0_4, %c0_5] : memref<32x128xbf16, #tpu.memory_space<vmem>>, vector<32x128xbf16>
    %cst = arith.constant dense<0.000000e+00> : vector<128x128xf32>
    %6 = tpu.matmul %4, %5, %cst {dimension_numbers = #tpu.dot_dimension_numbers<[1], [0], [0], [1], [0, 0, 1, 1], [], []>} : vector<128x32xbf16>, vector<32x128xbf16>, vector<128x128xf32> -> vector<128x128xf32>
    %7 = arith.addf %3, %6 : vector<128x128xf32>
    %c0_6 = arith.constant 0 : index
    %c0_7 = arith.constant 0 : index
    %8 = vector.load %arg8[%c0_6, %c0_7] : memref<128x128xf32, #tpu.memory_space<vmem>>, vector<128x128xf32>
    tpu.vector_store %arg8[%c0_6, %c0_7], %7 {strides = array<i32>} : memref<128x128xf32, #tpu.memory_space<vmem>>, vector<128x128xf32>,
    %c0_i32_8 = arith.constant 0 : i32
    %9 = arith.cmpi eq, %arg2, %c0_i32_8 : i32
    %10 = arith.extui %9 : i1 to i32
    %c0_i32_9 = arith.constant 0 : i32
    %11 = arith.cmpi ne, %10, %c0_i32_9 : i32
    scf.if %11 {
      %c0_10 = arith.constant 0 : index
      %c0_11 = arith.constant 0 : index
      %12 = vector.load %arg8[%c0_10, %c0_11] : memref<128x128xf32, #tpu.memory_space<vmem>>, vector<128x128xf32>
      %c0_12 = arith.constant 0 : index
      %c0_13 = arith.constant 0 : index
      %13 = vector.load %arg5[%c0_12, %c0_13] : memref<1x128xf32, #tpu.memory_space<vmem>>, vector<1x128xf32>
      %14 = vector.broadcast %13 : vector<1x128xf32> to vector<128x128xf32>
      %15 = arith.mulf %12, %14 : vector<128x128xf32>
      %c0_14 = arith.constant 0 : index
      %c0_15 = arith.constant 0 : index
      %16 = vector.load %arg6[%c0_14, %c0_15] : memref<1x128xf32, #tpu.memory_space<vmem>>, vector<1x128xf32>
      %17 = vector.broadcast %16 : vector<1x128xf32> to vector<128x128xf32>
      %18 = arith.addf %15, %17 : vector<128x128xf32>
      %c0_16 = arith.constant 0 : index
      %c0_17 = arith.constant 0 : index
      %19 = vector.load %arg7[%c0_16, %c0_17] : memref<128x128xf32, #tpu.memory_space<vmem>>, vector<128x128xf32>
      tpu.vector_store %arg7[%c0_16, %c0_17], %18 {strides = array<i32>} : memref<128x128xf32, #tpu.memory_space<vmem>>, vector<128x128xf32>,
    } else {
    }
    return
  }
  func.func @transform_0(%arg0: i32, %arg1: i32, %arg2: i32) -> (i32, i32) {
    %c0_i32 = arith.constant 0 : i32
    return %arg0, %arg2 : i32, i32
  }
  func.func @transform_1(%arg0: i32, %arg1: i32, %arg2: i32) -> (i32, i32) {
    %c0_i32 = arith.constant 0 : i32
    return %arg2, %arg1 : i32, i32
  }
  func.func @transform_2(%arg0: i32, %arg1: i32, %arg2: i32) -> (i32, i32) {
    %c0_i32 = arith.constant 0 : i32
    %c0_i32_0 = arith.constant 0 : i32
    return %c0_i32, %arg1 : i32, i32
  }
  func.func @transform_3(%arg0: i32, %arg1: i32, %arg2: i32) -> (i32, i32) {
    %c0_i32 = arith.constant 0 : i32
    %c0_i32_0 = arith.constant 0 : i32
    return %c0_i32, %arg1 : i32, i32
  }
  func.func @transform_4(%arg0: i32, %arg1: i32, %arg2: i32) -> (i32, i32) {
    %c0_i32 = arith.constant 0 : i32
    return %arg0, %arg1 : i32, i32
  }
}

</mosaic_0001>

<llo_original>
// kernel: tpu_custom_call.1
$region0: #{tpu_custom_call.1}
  #allocation0 [shape = 'u32[]', space=smem, size = 0x4, offset = 0x4, fixed_abs, tag = 'smem constant byte address 0x4 - core index']
  #allocation1 [shape = 'u32[72,128]{1,0:T(1,128)}', space=vmem, size = 0x9000, scoped, tag = 'internal scratch']
  #allocation2 [shape = 'f32[128,128]{1,0:T(8,128)}', space=vmem, size = 0x10000, scoped, tag = 'scratch operand']
  %s0 = inlined_call_operand.vmem [shape: bf16[128,32], index: 0, kind: input, shape index: {}]
  %s1 = inlined_call_operand.vmem [shape: bf16[32,128], index: 1, kind: input, shape index: {}]
  %s2 = inlined_call_operand.vmem [shape: f32[1,128], index: 2, kind: input, shape index: {}]
  %s3 = inlined_call_operand.vmem [shape: f32[1,128], index: 3, kind: input, shape index: {}]
  %s4 = inlined_call_operand.hbm [shape: f32[128,128], index: 4, kind: output, shape index: {}]
  %s5 = sld [smem:[#allocation0]]
  $region34: #{tpu_custom_call.1} parent=0
    _
  %s7 = ssub.s32 1, %s5
  %s8 = scalar_select 0, %s7, %s5
  $region1: #{tpu_custom_call.1} parent=0
    #allocation3 [shape = 'u8[65536]{0}', space=vmem, size = 0x10000, scoped, tag = 'output window, operand 0, single buffered']
    #allocation4 [shape = 's32[1]{0}', space=sflag, size = 0x4, scoped, tag = 'scoped memory for tpu_custom_call.1']
    %9 = vsyncpa [#allocation4], 0
    // Predicated region
    $region2: #{tpu_custom_call.1} parent=1 // pred_check
      _
    $region3: #{tpu_custom_call.1} parent=1 // pred_check_branch
      %11 = sbr.rel (0) target = $region5
    $region4: #{tpu_custom_call.1} parent=1 // pred_region
      _
    $region5: #{tpu_custom_call.1} parent=1 // pred_fallthru
      _
    // Predicated region
    $region6: #{tpu_custom_call.1} parent=1 // pred_check
      _
    $region7: #{tpu_custom_call.1} parent=1 // pred_check_branch
      %13 = sbr.rel (0) target = $region9
    $region8: #{tpu_custom_call.1} parent=1 // pred_region
      _
    $region9: #{tpu_custom_call.1} parent=1 // pred_fallthru
      _
    // Predicated region
    $region10: #{tpu_custom_call.1} parent=1 // pred_check
      _
    $region11: #{tpu_custom_call.1} parent=1 // pred_check_branch
      %15 = sbr.rel (0) target = $region13
    $region12: #{tpu_custom_call.1} parent=1 // pred_region
      _
    $region13: #{tpu_custom_call.1} parent=1 // pred_fallthru
      _
    // Predicated region
    $region14: #{tpu_custom_call.1} parent=1 // pred_check
      _
    $region15: #{tpu_custom_call.1} parent=1 // pred_check_branch
      %17 = sbr.rel (0) target = $region17
    $region16: #{tpu_custom_call.1} parent=1 // pred_region
      _
    $region17: #{tpu_custom_call.1} parent=1 // pred_fallthru
      _
    %p19 = scmp.eq.s32.totalorder 0, 0
    // Predicated region
    $region18: #{tpu_custom_call.1} parent=1 // pred_check
      %p20 = pneg %p19
    $region19: #{tpu_custom_call.1} parent=1 // pred_check_branch
      %22 = sbr.rel (%p20) target = $region21
    $region20: #{tpu_custom_call.1} parent=1 // pred_region
      %23 = vst [vmem:[#allocation2] sm:$0xff] 0.0
      %24 = vst [vmem:[#allocation2 + $0x8] sm:$0xff] 0.0
      %25 = vst [vmem:[#allocation2 + $0x10] sm:$0xff] 0.0
      %26 = vst [vmem:[#allocation2 + $0x18] sm:$0xff] 0.0
      %27 = vst [vmem:[#allocation2 + $0x20] sm:$0xff] 0.0
      %28 = vst [vmem:[#allocation2 + $0x28] sm:$0xff] 0.0
      %29 = vst [vmem:[#allocation2 + $0x30] sm:$0xff] 0.0
      %30 = vst [vmem:[#allocation2 + $0x38] sm:$0xff] 0.0
      %31 = vst [vmem:[#allocation2 + $0x40] sm:$0xff] 0.0
      %32 = vst [vmem:[#allocation2 + $0x48] sm:$0xff] 0.0
      %33 = vst [vmem:[#allocation2 + $0x50] sm:$0xff] 0.0
      %34 = vst [vmem:[#allocation2 + $0x58] sm:$0xff] 0.0
      %35 = vst [vmem:[#allocation2 + $0x60] sm:$0xff] 0.0
      %36 = vst [vmem:[#allocation2 + $0x68] sm:$0xff] 0.0
      %37 = vst [vmem:[#allocation2 + $0x70] sm:$0xff] 0.0
      %38 = vst [vmem:[#allocation2 + $0x78] sm:$0xff] 0.0
    $region21: #{tpu_custom_call.1} parent=1 // pred_fallthru
      _
    %v39 = vld [vmem:[#allocation2] sm:$0xff]
    %v40 = vld [vmem:[#allocation2 + $0x8] sm:$0xff]
    %v41 = vld [vmem:[#allocation2 + $0x10] sm:$0xff]
    %v42 = vld [vmem:[#allocation2 + $0x18] sm:$0xff]
    %v43 = vld [vmem:[#allocation2 + $0x20] sm:$0xff]
    %v44 = vld [vmem:[#allocation2 + $0x28] sm:$0xff]
    %v45 = vld [vmem:[#allocation2 + $0x30] sm:$0xff]
    %v46 = vld [vmem:[#allocation2 + $0x38] sm:$0xff]
    %v47 = vld [vmem:[#allocation2 + $0x40] sm:$0xff]
    %v48 = vld [vmem:[#allocation2 + $0x48] sm:$0xff]
    %v49 = vld [vmem:[#allocation2 + $0x50] sm:$0xff]
    %v50 = vld [vmem:[#allocation2 + $0x58] sm:$0xff]
    %v51 = vld [vmem:[#allocation2 + $0x60] sm:$0xff]
    %v52 = vld [vmem:[#allocation2 + $0x68] sm:$0xff]
    %v53 = vld [vmem:[#allocation2 + $0x70] sm:$0xff]
    %v54 = vld [vmem:[#allocation2 + $0x78] sm:$0xff]
    %v55 = vld [vmem:[%s0] sm:$0xf]
    %v56 = vld [vmem:[%s0 + $0x4] sm:$0xf]
    %v57 = vld [vmem:[%s0 + $0x8] sm:$0xf]
    %v58 = vld [vmem:[%s0 + $0xc] sm:$0xf]
    %v59 = vld [vmem:[%s0 + $0x10] sm:$0xf]
    %v60 = vld [vmem:[%s0 + $0x14] sm:$0xf]
    %v61 = vld [vmem:[%s0 + $0x18] sm:$0xf]
    %v62 = vld [vmem:[%s0 + $0x1c] sm:$0xf]
    %v63 = vld [vmem:[%s0 + $0x20] sm:$0xf]
    %v64 = vld [vmem:[%s0 + $0x24] sm:$0xf]
    %v65 = vld [vmem:[%s0 + $0x28] sm:$0xf]
    %v66 = vld [vmem:[%s0 + $0x2c] sm:$0xf]
    %v67 = vld [vmem:[%s0 + $0x30] sm:$0xf]
    %v68 = vld [vmem:[%s0 + $0x34] sm:$0xf]
    %v69 = vld [vmem:[%s0 + $0x38] sm:$0xf]
    %v70 = vld [vmem:[%s0 + $0x3c] sm:$0xf]
    %v71 = vld [vmem:[%s1] sm:$0xf]
    %v72 = vld [vmem:[%s1 + $0x4] sm:$0xf]
    %v73 = vld [vmem:[%s1 + $0x8] sm:$0xf]
    %v74 = vld [vmem:[%s1 + $0xc] sm:$0xf]
    %v91 = vunpack.c.l.b16 %v55
    %v92 = vunpack.c.l.b16 %v56
    %v93 = vunpack.c.l.b16 %v57
    %v94 = vunpack.c.l.b16 %v58
    %v95 = vunpack.c.l.b16 %v59
    %v96 = vunpack.c.l.b16 %v60
    %v97 = vunpack.c.l.b16 %v61
    %v98 = vunpack.c.l.b16 %v62
    %v99 = vunpack.c.l.b16 %v63
    %v100 = vunpack.c.l.b16 %v64
    %v101 = vunpack.c.l.b16 %v65
    %v102 = vunpack.c.l.b16 %v66
    %v103 = vunpack.c.l.b16 %v67
    %v104 = vunpack.c.l.b16 %v68
    %v105 = vunpack.c.l.b16 %v69
    %v106 = vunpack.c.l.b16 %v70
    %v107 = vpack.c.b16 %v92, %v91
    %v108 = vpack.c.b16 %v94, %v93
    %v109 = vpack.c.b16 %v96, %v95
    %v110 = vpack.c.b16 %v98, %v97
    %v111 = vpack.c.b16 %v100, %v99
    %v112 = vpack.c.b16 %v102, %v101
    %v113 = vpack.c.b16 %v104, %v103
    %v114 = vpack.c.b16 %v106, %v105
    %v119 = vunpack.c.l.b16 %v71
    %v120 = vunpack.c.l.b16 %v72
    %v121 = vunpack.c.l.b16 %v73
    %v122 = vunpack.c.l.b16 %v74
    %v123 = vpack.c.b16 %v120, %v119
    %v124 = vpack.c.b16 %v122, %v121
    %vm127 = vcmask 261120
    %v129 = vsel %vm127, %v107, 0
    %v132 = vsel %vm127, %v108, 0
    %v135 = vsel %vm127, %v109, 0
    %v138 = vsel %vm127, %v110, 0
    %v141 = vsel %vm127, %v111, 0
    %v144 = vsel %vm127, %v112, 0
    %v147 = vsel %vm127, %v113, 0
    %v150 = vsel %vm127, %v114, 0
    %152 = vmatpush.bf16.msra.mxu0 0
    %153 = vmatpush.bf16.msra.mxu0 0
    %154 = vmatpush.bf16.msra.mxu0 0
    %155 = vmatpush.bf16.msra.mxu0 0
    %156 = vmatpush.bf16.msra.mxu0 0
    %157 = vmatpush.bf16.msra.mxu0 0
    %158 = vmatpush.bf16.msra.mxu0 %v124
    %159 = vmatpush.bf16.msra.mxu0 %v123
    %160 = vmatmul.bf16.gmra.mxu0 %v129
    %v161 = vpop.f32.mrf.mxu0
    %v162 = vadd.f32 0.0, %v161
    %v163 = vpop.f32.mrf.mxu0
    %v164 = vadd.f32 0.0, %v163
    %165 = vmatmul.bf16.gmra.mxu0 %v132
    %v166 = vpop.f32.mrf.mxu0
    %v167 = vadd.f32 0.0, %v166
    %v168 = vpop.f32.mrf.mxu0
    %v169 = vadd.f32 0.0, %v168
    %170 = vmatmul.bf16.gmra.mxu0 %v135
    %v171 = vpop.f32.mrf.mxu0
    %v172 = vadd.f32 0.0, %v171
    %v173 = vpop.f32.mrf.mxu0
    %v174 = vadd.f32 0.0, %v173
    %175 = vmatmul.bf16.gmra.mxu0 %v138
    %v176 = vpop.f32.mrf.mxu0
    %v177 = vadd.f32 0.0, %v176
    %v178 = vpop.f32.mrf.mxu0
    %v179 = vadd.f32 0.0, %v178
    %180 = vmatmul.bf16.gmra.mxu0 %v141
    %v181 = vpop.f32.mrf.mxu0
    %v182 = vadd.f32 0.0, %v181
    %v183 = vpop.f32.mrf.mxu0
    %v184 = vadd.f32 0.0, %v183
    %185 = vmatmul.bf16.gmra.mxu0 %v144
    %v186 = vpop.f32.mrf.mxu0
    %v187 = vadd.f32 0.0, %v186
    %v188 = vpop.f32.mrf.mxu0
    %v189 = vadd.f32 0.0, %v188
    %190 = vmatmul.bf16.gmra.mxu0 %v147
    %v191 = vpop.f32.mrf.mxu0
    %v192 = vadd.f32 0.0, %v191
    %v193 = vpop.f32.mrf.mxu0
    %v194 = vadd.f32 0.0, %v193
    %195 = vmatmul.bf16.gmra.mxu0 %v150
    %v196 = vpop.f32.mrf.mxu0
    %v197 = vadd.f32 0.0, %v196
    %v198 = vpop.f32.mrf.mxu0
    %v199 = vadd.f32 0.0, %v198
    %200 = vdwg.mxu0
    %v201 = vadd.f32 %v39, %v162
    %v202 = vadd.f32 %v40, %v164
    %v203 = vadd.f32 %v41, %v167
    %v204 = vadd.f32 %v42, %v169
    %v205 = vadd.f32 %v43, %v172
    %v206 = vadd.f32 %v44, %v174
    %v207 = vadd.f32 %v45, %v177
    %v208 = vadd.f32 %v46, %v179
    %v209 = vadd.f32 %v47, %v182
    %v210 = vadd.f32 %v48, %v184
    %v211 = vadd.f32 %v49, %v187
    %v212 = vadd.f32 %v50, %v189
    %v213 = vadd.f32 %v51, %v192
    %v214 = vadd.f32 %v52, %v194
    %v215 = vadd.f32 %v53, %v197
    %v216 = vadd.f32 %v54, %v199
    %217 = vst [vmem:[#allocation2] sm:$0xff] %v201
    %218 = vst [vmem:[#allocation2 + $0x8] sm:$0xff] %v202
    %219 = vst [vmem:[#allocation2 + $0x10] sm:$0xff] %v203
    %220 = vst [vmem:[#allocation2 + $0x18] sm:$0xff] %v204
    %221 = vst [vmem:[#allocation2 + $0x20] sm:$0xff] %v205
    %222 = vst [vmem:[#allocation2 + $0x28] sm:$0xff] %v206
    %223 = vst [vmem:[#allocation2 + $0x30] sm:$0xff] %v207
    %224 = vst [vmem:[#allocation2 + $0x38] sm:$0xff] %v208
    %225 = vst [vmem:[#allocation2 + $0x40] sm:$0xff] %v209
    %226 = vst [vmem:[#allocation2 + $0x48] sm:$0xff] %v210
    %227 = vst [vmem:[#allocation2 + $0x50] sm:$0xff] %v211
    %228 = vst [vmem:[#allocation2 + $0x58] sm:$0xff] %v212
    %229 = vst [vmem:[#allocation2 + $0x60] sm:$0xff] %v213
    %230 = vst [vmem:[#allocation2 + $0x68] sm:$0xff] %v214
    %231 = vst [vmem:[#allocation2 + $0x70] sm:$0xff] %v215
    %232 = vst [vmem:[#allocation2 + $0x78] sm:$0xff] %v216
    // Predicated region
    $region22: #{tpu_custom_call.1} parent=1 // pred_check
      %p233 = pneg %p19
    $region23: #{tpu_custom_call.1} parent=1 // pred_check_branch
      %235 = sbr.rel (%p233) target = $region25
    $region24: #{tpu_custom_call.1} parent=1 // pred_region
      %v236 = vld [vmem:[#allocation2] sm:$0xff]
      %v237 = vld [vmem:[#allocation2 + $0x8] sm:$0xff]
      %v238 = vld [vmem:[#allocation2 + $0x10] sm:$0xff]
      %v239 = vld [vmem:[#allocation2 + $0x18] sm:$0xff]
      %v240 = vld [vmem:[#allocation2 + $0x20] sm:$0xff]
      %v241 = vld [vmem:[#allocation2 + $0x28] sm:$0xff]
      %v242 = vld [vmem:[#allocation2 + $0x30] sm:$0xff]
      %v243 = vld [vmem:[#allocation2 + $0x38] sm:$0xff]
      %v244 = vld [vmem:[#allocation2 + $0x40] sm:$0xff]
      %v245 = vld [vmem:[#allocation2 + $0x48] sm:$0xff]
      %v246 = vld [vmem:[#allocation2 + $0x50] sm:$0xff]
      %v247 = vld [vmem:[#allocation2 + $0x58] sm:$0xff]
      %v248 = vld [vmem:[#allocation2 + $0x60] sm:$0xff]
      %v249 = vld [vmem:[#allocation2 + $0x68] sm:$0xff]
      %v250 = vld [vmem:[#allocation2 + $0x70] sm:$0xff]
      %v251 = vld [vmem:[#allocation2 + $0x78] sm:$0xff]
      %v252 = vld [vmem:[%s2] sm:$0x1]
      %v254 = vperm.slane %v252, 0
      %v256 = vmul.f32 %v236, %v254
      %v257 = vmul.f32 %v237, %v254
      %v258 = vmul.f32 %v238, %v254
      %v259 = vmul.f32 %v239, %v254
      %v260 = vmul.f32 %v240, %v254
      %v261 = vmul.f32 %v241, %v254
      %v262 = vmul.f32 %v242, %v254
      %v263 = vmul.f32 %v243, %v254
      %v264 = vmul.f32 %v244, %v254
      %v265 = vmul.f32 %v245, %v254
      %v266 = vmul.f32 %v246, %v254
      %v267 = vmul.f32 %v247, %v254
      %v268 = vmul.f32 %v248, %v254
      %v269 = vmul.f32 %v249, %v254
      %v270 = vmul.f32 %v250, %v254
      %v271 = vmul.f32 %v251, %v254
      %v272 = vld [vmem:[%s3] sm:$0x1]
      %v274 = vperm.slane %v272, 0
      %v276 = vadd.f32 %v256, %v274
      %v277 = vadd.f32 %v257, %v274
      %v278 = vadd.f32 %v258, %v274
      %v279 = vadd.f32 %v259, %v274
      %v280 = vadd.f32 %v260, %v274
      %v281 = vadd.f32 %v261, %v274
      %v282 = vadd.f32 %v262, %v274
      %v283 = vadd.f32 %v263, %v274
      %v284 = vadd.f32 %v264, %v274
      %v285 = vadd.f32 %v265, %v274
      %v286 = vadd.f32 %v266, %v274
      %v287 = vadd.f32 %v267, %v274
      %v288 = vadd.f32 %v268, %v274
      %v289 = vadd.f32 %v269, %v274
      %v290 = vadd.f32 %v270, %v274
      %v291 = vadd.f32 %v271, %v274
      %292 = vst [vmem:[#allocation3] sm:$0xff] %v276
      %293 = vst [vmem:[#allocation3 + $0x8] sm:$0xff] %v277
      %294 = vst [vmem:[#allocation3 + $0x10] sm:$0xff] %v278
      %295 = vst [vmem:[#allocation3 + $0x18] sm:$0xff] %v279
      %296 = vst [vmem:[#allocation3 + $0x20] sm:$0xff] %v280
      %297 = vst [vmem:[#allocation3 + $0x28] sm:$0xff] %v281
      %298 = vst [vmem:[#allocation3 + $0x30] sm:$0xff] %v282
      %299 = vst [vmem:[#allocation3 + $0x38] sm:$0xff] %v283
      %300 = vst [vmem:[#allocation3 + $0x40] sm:$0xff] %v284
      %301 = vst [vmem:[#allocation3 + $0x48] sm:$0xff] %v285
      %302 = vst [vmem:[#allocation3 + $0x50] sm:$0xff] %v286
      %303 = vst [vmem:[#allocation3 + $0x58] sm:$0xff] %v287
      %304 = vst [vmem:[#allocation3 + $0x60] sm:$0xff] %v288
      %305 = vst [vmem:[#allocation3 + $0x68] sm:$0xff] %v289
      %306 = vst [vmem:[#allocation3 + $0x70] sm:$0xff] %v290
      %307 = vst [vmem:[#allocation3 + $0x78] sm:$0xff] %v291
    $region25: #{tpu_custom_call.1} parent=1 // pred_fallthru
      _
    // Predicated region
    $region26: #{tpu_custom_call.1} parent=1 // pred_check
      _
    $region27: #{tpu_custom_call.1} parent=1 // pred_check_branch
      %309 = sbr.rel (0) target = $region29
    $region28: #{tpu_custom_call.1} parent=1 // pred_region
      %311 = vsyncadd [#allocation4], 0
      %s312 = sshll.u32 [#allocation3], 4
      %s313 = int_to_ptr.vmem [resolvable:$true] %s312
      %s314 = sshll.u32 %s4, 4
      %s315 = int_to_ptr.hbm [resolvable:$true] %s314
      %320 = dma.vmem_to_hbm [thread:$0]  %s313, 2048, %s315, [#allocation4], 128, 128, 8
    $region29: #{tpu_custom_call.1} parent=1 // pred_fallthru
      _
    // Predicated region
    $region30: #{tpu_custom_call.1} parent=1 // pred_check
      _
    $region31: #{tpu_custom_call.1} parent=1 // pred_check_branch
      %322 = sbr.rel (0) target = $region33
    $region32: #{tpu_custom_call.1} parent=1 // pred_region
      %324 = dma.done [#allocation4], 2048
    $region33: #{tpu_custom_call.1} parent=1 // pred_fallthru
      _
    %325 = vsyncpa [#allocation4], 1

</llo_original>
